<compile_context>
chip_gen: v7x
topology: tpu7x:2x2x1
jax: 0.10.0
libtpu: 0.0.40
codegen_flags: <defaults>
</compile_context>

<pallas_src>
import functools

import jax
import jax.numpy as jnp
from jax.experimental import pallas as pl
from jax.experimental.pallas import tpu as pltpu

_LANES = 128
_SUBLANES = 8


def _round_up(x, m):
    return ((x + m - 1) // m) * m


def _sinsin_kernel(alpha_ref, beta_ref, xy_ref, out_ref):
    # alpha_ref / beta_ref: SMEM scalars of shape (1,)
    api = alpha_ref[0] * jnp.float32(jnp.pi)   # hoisted scalar alpha * pi
    b = beta_ref[0]
    xs = xy_ref[0]                             # (br, 128) x-coordinates
    ys = xy_ref[1]                             # (br, 128) y-coordinates
    out_ref[...] = b * (jnp.sin(api * xs) * jnp.sin(api * ys))


@functools.partial(jax.jit, static_argnames=("block_rows",))
def sinsin_ab(pts, alpha, beta, *, block_rows=2048):
    """pts: [N, 2] float32 (cols = x, y coords). Returns [N, 1] float32."""
    n = pts.shape[0]

    alpha = jnp.asarray(alpha, jnp.float32).reshape(1)
    beta = jnp.asarray(beta, jnp.float32).reshape(1)

    # Tile geometry: 128 lanes per row of points, br sublane-rows per grid step.
    rows = pl.cdiv(n, _LANES)
    # br: as large as block_rows, but keep ~10 grid steps (megacore balance on
    # v7x) and bound the round-up padding waste to <= ~10%.
    br = max(_SUBLANES,
             min(block_rows, _round_up(pl.cdiv(rows, 10), _SUBLANES)))
    rows_p = _round_up(rows, br)
    grid = rows_p // br
    npad = rows_p * _LANES

    # Single fused wrapper pass: (optional pad) + AoS->SoA transpose + reshape.
    pts32 = pts.astype(jnp.float32)
    if npad != n:
        pts32 = jnp.pad(pts32, ((0, npad - n), (0, 0)))   # sin(0)=0, sliced off later
    xy3 = pts32.T.reshape(2, rows_p, _LANES)              # (2, rows_p, 128) SoA slab

    out = pl.pallas_call(
        _sinsin_kernel,
        out_shape=jax.ShapeDtypeStruct((rows_p, _LANES), jnp.float32),
        grid=(grid,),
        in_specs=[
            pl.BlockSpec(memory_space=pltpu.SMEM),                 # alpha
            pl.BlockSpec(memory_space=pltpu.SMEM),                 # beta
            pl.BlockSpec((2, br, _LANES), lambda i: (0, i, 0)),    # x/y planes
        ],
        out_specs=pl.BlockSpec((br, _LANES), lambda i: (i, 0)),
        compiler_params=pltpu.CompilerParams(
            dimension_semantics=("parallel",)),
    )(alpha, beta, xy3)

    # Back to PyTorch-style [N, 1]; reshape is free, slice only when padded.
    out = out.reshape(npad, 1)
    if npad != n:
        out = out[:n]
    return out


def _reference(pts, alpha, beta):
    return (beta[0]
            * jnp.sin(alpha[0] * pts[:, 0:1] * jnp.pi)
            * jnp.sin(alpha[0] * pts[:, 1:2] * jnp.pi))


if __name__ == "__main__":
    # Matches torch.nn.Parameter(torch.tensor([1.0])) for alpha and beta.
    alpha = jnp.array([1.0], dtype=jnp.float32)
    beta = jnp.array([1.0], dtype=jnp.float32)

    # Case 1: small N (256 points with 'x','y' columns).
    pts = jax.random.uniform(jax.random.PRNGKey(0), (256, 2), dtype=jnp.float32)
    out = jax.block_until_ready(sinsin_ab(pts, alpha, beta))
    ref = _reference(pts, alpha, beta)
    assert out.shape == (256, 1)
    assert jnp.allclose(out, ref, atol=1e-6)

    # Case 2: ragged N (not a multiple of 128) exercises the padding path.
    pts2 = jax.random.uniform(jax.random.PRNGKey(1), (300, 2), dtype=jnp.float32)
    out2 = jax.block_until_ready(sinsin_ab(pts2, alpha, beta))
    ref2 = _reference(pts2, alpha, beta)
    assert out2.shape == (300, 1)
    assert jnp.allclose(out2, ref2, atol=1e-6)

    # Case 3: larger N exercising a multi-step grid (adaptive block rows).
    pts3 = jax.random.uniform(jax.random.PRNGKey(2), (100000, 2), dtype=jnp.float32)
    out3 = jax.block_until_ready(sinsin_ab(pts3, alpha, beta))
    ref3 = _reference(pts3, alpha, beta)
    assert out3.shape == (100000, 1)
    assert jnp.allclose(out3, ref3, atol=1e-6)

    print("KERNEL_OK")
</pallas_src>

<mosaic_0001>
module attributes {stable_mosaic.version = 11 : i64} {
  func.func @_sinsin_kernel(%arg0: i32, %arg1: memref<1xf32, #tpu.memory_space<smem>>, %arg2: memref<1xf32, #tpu.memory_space<smem>>, %arg3: memref<2x8x128xf32, #tpu.memory_space<vmem>>, %arg4: memref<8x128xf32, #tpu.memory_space<vmem>>) attributes {dimension_semantics = [#tpu.dimension_semantics<parallel>], iteration_bounds = array<i64: 1>, scalar_prefetch = 0 : i64, scratch_operands = 0 : i64, tpu.core_type = #tpu.core_type<tc>, window_params = [{transform_indices = @transform_0, window_bounds = array<i64: 1>}, {transform_indices = @transform_1, window_bounds = array<i64: 1>}, {transform_indices = @transform_2, window_bounds = array<i64: 2, 8, 128>}, {transform_indices = @transform_3, window_bounds = array<i64: 8, 128>}]} {
    %c0 = arith.constant 0 : index
    %0 = memref.load %arg1[%c0] : memref<1xf32, #tpu.memory_space<smem>>
    %cst = arith.constant 3.14159274 : f32
    %1 = arith.mulf %0, %cst : f32
    %c0_0 = arith.constant 0 : index
    %2 = memref.load %arg2[%c0_0] : memref<1xf32, #tpu.memory_space<smem>>
    %c0_1 = arith.constant 0 : index
    %c0_2 = arith.constant 0 : index
    %c0_3 = arith.constant 0 : index
    %3 = vector.load %arg3[%c0_1, %c0_2, %c0_3] : memref<2x8x128xf32, #tpu.memory_space<vmem>>, vector<1x8x128xf32>
    %4 = vector.shape_cast %3 : vector<1x8x128xf32> to vector<8x128xf32>
    %c1 = arith.constant 1 : index
    %c0_4 = arith.constant 0 : index
    %c0_5 = arith.constant 0 : index
    %5 = vector.load %arg3[%c1, %c0_4, %c0_5] : memref<2x8x128xf32, #tpu.memory_space<vmem>>, vector<1x8x128xf32>
    %6 = vector.shape_cast %5 : vector<1x8x128xf32> to vector<8x128xf32>
    %7 = vector.broadcast %1 : f32 to vector<8x128xf32>
    %8 = arith.mulf %7, %4 : vector<8x128xf32>
    %9 = math.sin %8 : vector<8x128xf32>
    %10 = vector.broadcast %1 : f32 to vector<8x128xf32>
    %11 = arith.mulf %10, %6 : vector<8x128xf32>
    %12 = math.sin %11 : vector<8x128xf32>
    %13 = arith.mulf %9, %12 : vector<8x128xf32>
    %14 = vector.broadcast %2 : f32 to vector<8x128xf32>
    %15 = arith.mulf %14, %13 : vector<8x128xf32>
    %c0_6 = arith.constant 0 : index
    %c0_7 = arith.constant 0 : index
    %16 = vector.load %arg4[%c0_6, %c0_7] : memref<8x128xf32, #tpu.memory_space<vmem>>, vector<8x128xf32>
    tpu.vector_store %arg4[%c0_6, %c0_7], %15 {strides = array<i32>} : memref<8x128xf32, #tpu.memory_space<vmem>>, vector<8x128xf32>,
    return
  }
  func.func @transform_0(%arg0: i32) -> i32 {
    %c0_i32 = arith.constant 0 : i32
    %c0_i32_0 = arith.constant 0 : i32
    return %c0_i32 : i32
  }
  func.func @transform_1(%arg0: i32) -> i32 {
    %c0_i32 = arith.constant 0 : i32
    %c0_i32_0 = arith.constant 0 : i32
    return %c0_i32 : i32
  }
  func.func @transform_2(%arg0: i32) -> (i32, i32, i32) {
    %c0_i32 = arith.constant 0 : i32
    %c0_i32_0 = arith.constant 0 : i32
    %c0_i32_1 = arith.constant 0 : i32
    return %c0_i32, %arg0, %c0_i32_0 : i32, i32, i32
  }
  func.func @transform_3(%arg0: i32) -> (i32, i32) {
    %c0_i32 = arith.constant 0 : i32
    %c0_i32_0 = arith.constant 0 : i32
    return %arg0, %c0_i32 : i32, i32
  }
}

</mosaic_0001>

<llo_original>
// kernel: sinsin_ab.1
$region0: #{sinsin_ab.1}
  #allocation0 [shape = 'u32[]', space=smem, size = 0x4, offset = 0x4, fixed_abs, tag = 'smem constant byte address 0x4 - core index']
  #allocation1 [shape = 'u32[144,128]{1,0:T(1,128)}', space=vmem, size = 0x12000, scoped, tag = 'internal scratch']
  #allocation2 [shape = 'f32[1]{0:T(128)S(6)}', space=smem, size = 0x200, scoped, tag = 'scoped memory for sinsin_ab.1']
  #allocation3 [shape = 'f32[1]{0:T(128)S(6)}', space=smem, size = 0x200, scoped, tag = 'scoped memory for sinsin_ab.1']
  %s0 = inlined_call_operand.<no memory space> [shape: f32[1], index: 0, kind: input, shape index: {}]
  %s1 = inlined_call_operand.<no memory space> [shape: f32[1], index: 1, kind: input, shape index: {}]
  %s2 = inlined_call_operand.vmem [shape: f32[2,8,128], index: 2, kind: input, shape index: {}]
  %s3 = inlined_call_operand.vmem [shape: f32[8,128], index: 3, kind: output, shape index: {}]
  %s4 = sld [smem:[#allocation0]]
  $region22: #{sinsin_ab.1} parent=0
    _
  %s6 = ssub.s32 1, %s4
  %s7 = scalar_select 0, %s6, %s4
  %8 = sst [smem:[#allocation2]] %s0
  %9 = sst [smem:[#allocation3]] %s1
  // Predicated region
  $region2: #{sinsin_ab.1} parent=0 // pred_check
    _
  $region3: #{sinsin_ab.1} parent=0 // pred_check_branch
    %11 = sbr.rel (0) target = $region5
  $region4: #{sinsin_ab.1} parent=0 // pred_region
    _
  $region5: #{sinsin_ab.1} parent=0 // pred_fallthru
    _
  // Predicated region
  $region6: #{sinsin_ab.1} parent=0 // pred_check
    _
  $region7: #{sinsin_ab.1} parent=0 // pred_check_branch
    %13 = sbr.rel (0) target = $region9
  $region8: #{sinsin_ab.1} parent=0 // pred_region
    _
  $region9: #{sinsin_ab.1} parent=0 // pred_fallthru
    _
  // Predicated region
  $region10: #{sinsin_ab.1} parent=0 // pred_check
    _
  $region11: #{sinsin_ab.1} parent=0 // pred_check_branch
    %15 = sbr.rel (0) target = $region13
  $region12: #{sinsin_ab.1} parent=0 // pred_region
    _
  $region13: #{sinsin_ab.1} parent=0 // pred_fallthru
    _
  %s16 = sld [smem:[#allocation2]]
  %s17 = smul.f32 %s16, 3.1415927
  %s18 = sld [smem:[#allocation3]]
  %v19 = vld [vmem:[%s2] sm:$0xff]
  %s20 = scalar_lea.vmem %s2, 8
  %v21 = vld [vmem:[%s20] sm:$0xff]
  %v22 = vstv %s17
  %v23 = vmul.f32 %v22, %v19
  %v24 = vand.u32 2147483647, %v23
  %vm25 = vcmp.le.f32.partialorder %v24, 0.7853982
  %vm26 = vcmp.lt.s32.totalorder %v23, 0
  %v27 = vand.u32 %v23, 2139095040
  %v28 = vshrl.u32 %v27, 23
  %v29 = vsub.s32 %v28, 127
  %v30 = vand.u32 2147483647, %v23
  %v31 = vand.u32 %v30, 8388607
  %v32 = vor.u32 %v31, 8388608
  %v33 = vsub.s32 0, %v32
  %v34 = vadd.s32 %v29, 1
  %vm35 = vcmp.gt.s32.totalorder %v34, 0
  %v36 = vsel %vm35, %v34, 0
  %v37 = vshrl.u32 %v36, 5
  %v38 = vand.u32 %v36, 31
  %v39 = vsub.s32 32, %v38
  %v40 = vshrl.u32 683565275, %v39
  %v41 = vshll.u32 683565275, %v38
  %v42 = vshrl.u32 2475754826, %v39
  %v43 = vor.u32 %v41, %v42
  %v44 = vshll.u32 2475754826, %v38
  %v45 = vshrl.u32 2131351028, %v39
  %v46 = vor.u32 %v44, %v45
  %v47 = vshll.u32 2131351028, %v38
  %v48 = vshrl.u32 2102212464, %v39
  %v49 = vor.u32 %v47, %v48
  %v50 = vshll.u32 2102212464, %v38
  %v51 = vshrl.u32 920167782, %v39
  %v52 = vor.u32 %v50, %v51
  %v53 = vshll.u32 920167782, %v38
  %v54 = vshrl.u32 1326507024, %v39
  %v55 = vor.u32 %v53, %v54
  %vm56 = vcmp.lt.s32.totalorder %v37, 1
  %vm57 = vcmp.lt.s32.totalorder %v37, 2
  %vm58 = vcmp.lt.s32.totalorder %v37, 3
  %vm59 = vcmp.lt.s32.totalorder %v37, 4
  %v60 = vsel %vm56, %v40, %v43
  %v61 = vsel %vm59, %v49, 2102212464
  %v62 = vsel %vm58, %v46, %v61
  %v63 = vsel %vm57, %v60, %v62
  %v64 = vsel %vm56, %v43, %v46
  %v65 = vsel %vm59, %v52, 920167782
  %v66 = vsel %vm58, %v49, %v65
  %v67 = vsel %vm57, %v64, %v66
  %v68 = vsel %vm56, %v46, %v49
  %v69 = vsel %vm59, %v55, 1326507024
  %v70 = vsel %vm58, %v52, %v69
  %v71 = vsel %vm57, %v68, %v70
  %v72 = vshll.u32 %v32, 8
  %v73 = vmul.u32.u64.compose %v72, %v71
  %v74 = vextract.low.u32 %v73
  %v75 = vextract.high.u32 %v73
  %v76 = vmul.u32.u64.compose %v72, %v67
  %v77 = vextract.low.u32 %v76
  %v78 = vextract.high.u32 %v76
  %v79 = vmul.u32 %v72, %v63
  %v80 = vadd.s32 %v75, %v77
  %vm81 = vc.u32 %v75, %v77
  %v82 = vadd.s32 %v78, 1
  %v83 = vsel %vm81, %v82, %v78
  %v84 = vadd.s32 %v79, %v83
  %v85 = vadd.s32 %v84, 536870912
  %v86 = vshrl.u32 %v85, 30
  %v87 = vshll.u32 %v86, 30
  %v88 = vsub.s32 %v84, %v87
  %vm89 = vcmp.lt.s32.totalorder %v88, 0
  %v90 = vsub.s32 0, %v88
  %v91 = vsel %vm89, %v90, %v88
  %v92 = vclz %v91
  %v93 = vsub.s32 %v92, 2
  %vm94 = vcmp.gt.s32.totalorder 0, %v93
  %v95 = vsel %vm94, 0, %v93
  %v96 = vsub.s32 32, %v95
  %v97 = vshll.u32 %v88, %v95
  %v98 = vshrl.u32 %v80, %v96
  %v99 = vor.u32 %v97, %v98
  %v100 = vsub.s32 4294967266, %v95
  %v101 = vadd.s32 %v100, 127
  %v102 = vshll.u32 %v101, 23
  %v103 = vor.u32 4788187, %v102
  %v104 = vand.u32 2147483647, %v103
  %v106 = vcvt.s32.f32 %v99
  %v107 = vmul.f32 %v106, %v104
  %v108 = vxor.u32 %v107, 2147483648
  %v109 = vsel %vm26, %v108, %v107
  %v110 = vsub.s32 4, %v86
  %v111 = vsel %vm26, %v110, %v86
  %v112 = vsel %vm25, %v23, %v109
  %v113 = vsel %vm25, 0, %v111
  %v114 = vcosq.f32.pop %v112
  %v115 = vsinq.f32.pop %v112
  %vm116 = vweird.f32 %v23
  %v117 = vadd.s32 %v113, 3
  %v118 = vand.u32 %v117, 3
  %vm119 = vcmp.lt.s32.totalorder %v118, 2
  %vm120 = vcmp.eq.s32.totalorder %v118, 0
  %v121 = vxor.u32 %v115, 2147483648
  %v122 = vsel %vm120, %v114, %v121
  %vm123 = vcmp.eq.s32.totalorder %v118, 2
  %v124 = vxor.u32 %v114, 2147483648
  %v125 = vsel %vm123, %v124, %v115
  %v126 = vsel %vm119, %v122, %v125
  %v127 = vsel %vm116, nan, %v126
  %v128 = vmul.f32 %v22, %v21
  %v129 = vand.u32 2147483647, %v128
  %vm130 = vcmp.le.f32.partialorder %v129, 0.7853982
  %vm131 = vcmp.lt.s32.totalorder %v128, 0
  %v132 = vand.u32 %v128, 2139095040
  %v133 = vshrl.u32 %v132, 23
  %v134 = vsub.s32 %v133, 127
  %v135 = vand.u32 2147483647, %v128
  %v136 = vand.u32 %v135, 8388607
  %v137 = vor.u32 %v136, 8388608
  %v138 = vsub.s32 0, %v137
  %v139 = vadd.s32 %v134, 1
  %vm140 = vcmp.gt.s32.totalorder %v139, 0
  %v141 = vsel %vm140, %v139, 0
  %v142 = vshrl.u32 %v141, 5
  %v143 = vand.u32 %v141, 31
  %v144 = vsub.s32 32, %v143
  %v145 = vshrl.u32 683565275, %v144
  %v146 = vshll.u32 683565275, %v143
  %v147 = vshrl.u32 2475754826, %v144
  %v148 = vor.u32 %v146, %v147
  %v149 = vshll.u32 2475754826, %v143
  %v150 = vshrl.u32 2131351028, %v144
  %v151 = vor.u32 %v149, %v150
  %v152 = vshll.u32 2131351028, %v143
  %v153 = vshrl.u32 2102212464, %v144
  %v154 = vor.u32 %v152, %v153
  %v155 = vshll.u32 2102212464, %v143
  %v156 = vshrl.u32 920167782, %v144
  %v157 = vor.u32 %v155, %v156
  %v158 = vshll.u32 920167782, %v143
  %v159 = vshrl.u32 1326507024, %v144
  %v160 = vor.u32 %v158, %v159
  %vm161 = vcmp.lt.s32.totalorder %v142, 1
  %vm162 = vcmp.lt.s32.totalorder %v142, 2
  %vm163 = vcmp.lt.s32.totalorder %v142, 3
  %vm164 = vcmp.lt.s32.totalorder %v142, 4
  %v165 = vsel %vm161, %v145, %v148
  %v166 = vsel %vm164, %v154, 2102212464
  %v167 = vsel %vm163, %v151, %v166
  %v168 = vsel %vm162, %v165, %v167
  %v169 = vsel %vm161, %v148, %v151
  %v170 = vsel %vm164, %v157, 920167782
  %v171 = vsel %vm163, %v154, %v170
  %v172 = vsel %vm162, %v169, %v171
  %v173 = vsel %vm161, %v151, %v154
  %v174 = vsel %vm164, %v160, 1326507024
  %v175 = vsel %vm163, %v157, %v174
  %v176 = vsel %vm162, %v173, %v175
  %v177 = vshll.u32 %v137, 8
  %v178 = vmul.u32.u64.compose %v177, %v176
  %v179 = vextract.low.u32 %v178
  %v180 = vextract.high.u32 %v178
  %v181 = vmul.u32.u64.compose %v177, %v172
  %v182 = vextract.low.u32 %v181
  %v183 = vextract.high.u32 %v181
  %v184 = vmul.u32 %v177, %v168
  %v185 = vadd.s32 %v180, %v182
  %vm186 = vc.u32 %v180, %v182
  %v187 = vadd.s32 %v183, 1
  %v188 = vsel %vm186, %v187, %v183
  %v189 = vadd.s32 %v184, %v188
  %v190 = vadd.s32 %v189, 536870912
  %v191 = vshrl.u32 %v190, 30
  %v192 = vshll.u32 %v191, 30
  %v193 = vsub.s32 %v189, %v192
  %vm194 = vcmp.lt.s32.totalorder %v193, 0
  %v195 = vsub.s32 0, %v193
  %v196 = vsel %vm194, %v195, %v193
  %v197 = vclz %v196
  %v198 = vsub.s32 %v197, 2
  %vm199 = vcmp.gt.s32.totalorder 0, %v198
  %v200 = vsel %vm199, 0, %v198
  %v201 = vsub.s32 32, %v200
  %v202 = vshll.u32 %v193, %v200
  %v203 = vshrl.u32 %v185, %v201
  %v204 = vor.u32 %v202, %v203
  %v205 = vsub.s32 4294967266, %v200
  %v206 = vadd.s32 %v205, 127
  %v207 = vshll.u32 %v206, 23
  %v208 = vor.u32 4788187, %v207
  %v209 = vand.u32 2147483647, %v208
  %v211 = vcvt.s32.f32 %v204
  %v212 = vmul.f32 %v211, %v209
  %v213 = vxor.u32 %v212, 2147483648
  %v214 = vsel %vm131, %v213, %v212
  %v215 = vsub.s32 4, %v191
  %v216 = vsel %vm131, %v215, %v191
  %v217 = vsel %vm130, %v128, %v214
  %v218 = vsel %vm130, 0, %v216
  %v219 = vcosq.f32.pop %v217
  %v220 = vsinq.f32.pop %v217
  %vm221 = vweird.f32 %v128
  %v222 = vadd.s32 %v218, 3
  %v223 = vand.u32 %v222, 3
  %vm224 = vcmp.lt.s32.totalorder %v223, 2
  %vm225 = vcmp.eq.s32.totalorder %v223, 0
  %v226 = vxor.u32 %v220, 2147483648
  %v227 = vsel %vm225, %v219, %v226
  %vm228 = vcmp.eq.s32.totalorder %v223, 2
  %v229 = vxor.u32 %v219, 2147483648
  %v230 = vsel %vm228, %v229, %v220
  %v231 = vsel %vm224, %v227, %v230
  %v232 = vsel %vm221, nan, %v231
  %v233 = vmul.f32 %v127, %v232
  %v234 = vstv %s18
  %v235 = vmul.f32 %v234, %v233
  %236 = vst [vmem:[%s3] sm:$0xff] %v235
  // Predicated region
  $region14: #{sinsin_ab.1} parent=0 // pred_check
    _
  $region15: #{sinsin_ab.1} parent=0 // pred_check_branch
    %238 = sbr.rel (0) target = $region17
  $region16: #{sinsin_ab.1} parent=0 // pred_region
    _
  $region17: #{sinsin_ab.1} parent=0 // pred_fallthru
    _
  // Predicated region
  $region18: #{sinsin_ab.1} parent=0 // pred_check
    _
  $region19: #{sinsin_ab.1} parent=0 // pred_check_branch
    %240 = sbr.rel (0) target = $region21
  $region20: #{sinsin_ab.1} parent=0 // pred_region
    _
  $region21: #{sinsin_ab.1} parent=0 // pred_fallthru
    _

</llo_original>
